<compile_context>
chip_gen: v6e
topology: v6e:2x2x1
jax: 0.10.0
libtpu: 0.0.40
codegen_flags: <defaults>
</compile_context>

<pallas_src>
import functools
import math

import jax
import jax.numpy as jnp
from jax import lax
from jax.experimental import pallas as pl
from jax.experimental.pallas import tpu as pltpu

_LOG_10000 = math.log(10000.0)
_HALF_PI = math.pi / 2.0


def _pe_add_kernel(x_ref, o_ref, *, scale, d_model):
    """One (seq_len, bt*d_model) tile of the flattened (S, B*D) array.

    Because tile_cols is a multiple of d_model and column tiles start at batch
    boundaries, the feature index d = col % d_model is independent of the grid
    index, so all column-only math is computed once per tile on a (1, tile_cols)
    row and broadcast down the rows.
    """
    rows, tile_cols = x_ref.shape

    # --- column-only (hoisted) math: (1, tile_cols) ---
    d = lax.broadcasted_iota(jnp.int32, (1, tile_cols), 1) % d_model
    d_f = d.astype(jnp.float32)
    inv_freq = jnp.exp(d_f * (-2.0 * _LOG_10000 / d_model))      # 10000**(-2d/D)
    phase = (d & 1).astype(jnp.float32) * _HALF_PI               # 0 (even d) / pi/2 (odd d)

    # --- row-only math: (rows, 1). Rows are never tiled, so the row iota is the
    # absolute position already. ---
    pos = lax.broadcasted_iota(jnp.int32, (rows, 1), 0).astype(jnp.float32)

    # sin(x + pi/2) == cos(x): one transcendental per element instead of
    # sin + cos + select.
    pe = jnp.sin(pos * inv_freq + phase)

    # f32 math in-kernel (v5e has no bf16 VPU/EUP); cast only at the store.
    # NOTE: for a ragged last column tile the out-of-range lanes compute garbage
    # angles; Pallas masks them on store, so do NOT "fix" this with a clamp.
    x = x_ref[...].astype(jnp.float32)
    o_ref[...] = (x * scale + pe).astype(o_ref.dtype)


def positional_encoder_forward(x: jnp.ndarray, *, max_seq_len: int = 160,
                               tile_budget_bytes: int = 4 * 1024 * 1024) -> jnp.ndarray:
    """x: (seq_len, batch, d_model) -> x * sqrt(d_model) + pe[:seq_len, None, :]."""
    seq_len, batch, d_model = x.shape
    assert d_model % 2 == 0, "model dimension has to be a multiple of 2"
    assert seq_len <= max_seq_len, "sequence longer than PositionalEncoder.max_seq_len"

    scale = math.sqrt(d_model)            # pure Python constant, no device op
    cols = batch * d_model
    itemsize = x.dtype.itemsize
    x2 = x.reshape(seq_len, cols)         # lane-dense 2-D slab (free reshape)

    # Column tile = bt whole batch entries, sized against a per-buffer VMEM
    # budget (double-buffered in+out => ~4x tile resident in VMEM).
    bt = min(batch, max(1, tile_budget_bytes // (seq_len * d_model * itemsize)))

    # Prefer a lane-dense tile: smallest g with (g * d_model) % 128 == 0.
    g = 128 // math.gcd(d_model, 128)
    if bt >= g:
        bt = (bt // g) * g

    # v7x megacore: if everything would land in a single grid step but the array
    # is non-trivial, split columns so both TensorCores get work.
    if bt == batch and batch >= 2 * g and seq_len * cols * itemsize > (2 << 20):
        bt = max(g, ((batch // 2) // g) * g)

    tile_cols = bt * d_model
    grid = (pl.cdiv(batch, bt),)

    kernel = functools.partial(_pe_add_kernel, scale=scale, d_model=d_model)

    out2 = pl.pallas_call(
        kernel,
        out_shape=jax.ShapeDtypeStruct((seq_len, cols), x.dtype),
        grid=grid,
        in_specs=[pl.BlockSpec((seq_len, tile_cols), lambda j: (0, j))],
        out_specs=pl.BlockSpec((seq_len, tile_cols), lambda j: (0, j)),
        compiler_params=pltpu.CompilerParams(
            dimension_semantics=("parallel",),
            vmem_limit_bytes=32 * 1024 * 1024),
        cost_estimate=pl.CostEstimate(
            flops=4 * seq_len * cols,
            transcendentals=seq_len * cols,           # exactly one sin / element
            bytes_accessed=2 * seq_len * cols * itemsize),
    )(x2)

    return out2.reshape(seq_len, batch, d_model)


if __name__ == "__main__":
    # Small shapes consistent with the module's forward: (seq, batch, d_model).
    seq_len, batch, d_model, max_seq_len = 8, 2, 32, 160

    key = jax.random.PRNGKey(0)
    x = jax.random.normal(key, (seq_len, batch, d_model), dtype=jnp.float32)

    out = positional_encoder_forward(x, max_seq_len=max_seq_len)
    out = jax.block_until_ready(out)

    # Pure-JAX reference with the exact PyTorch-module math.
    pos = jnp.arange(seq_len, dtype=jnp.float32)[:, None]
    c = jnp.arange(d_model)[None, :]
    angles = pos / jnp.power(10000.0, 2.0 * c.astype(jnp.float32) / d_model)
    pe_ref = jnp.where(c % 2 == 0, jnp.sin(angles), jnp.cos(angles))
    ref = x * math.sqrt(d_model) + pe_ref[:, None, :]

    assert out.shape == (seq_len, batch, d_model)
    assert jnp.allclose(out, ref, atol=1e-4, rtol=1e-4), float(jnp.max(jnp.abs(out - ref)))

    print("KERNEL_OK")
</pallas_src>

<mosaic_0001>
module attributes {stable_mosaic.version = 11 : i64} {
  func.func @_pe_add_kernel(%arg0: i32, %arg1: memref<8x64xf32, #tpu.memory_space<vmem>>, %arg2: memref<8x64xf32, #tpu.memory_space<vmem>>) attributes {dimension_semantics = [#tpu.dimension_semantics<parallel>], iteration_bounds = array<i64: 1>, scalar_prefetch = 0 : i64, scratch_operands = 0 : i64, tpu.core_type = #tpu.core_type<tc>, window_params = [{transform_indices = @transform_0, window_bounds = array<i64: 8, 64>}, {transform_indices = @transform_1, window_bounds = array<i64: 8, 64>}]} {
    %0 = tpu.iota {dimensions = array<i32: 1>} : vector<1x64xi32>
    %c32_i32 = arith.constant 32 : i32
    %c0_i32 = arith.constant 0 : i32
    %1 = arith.cmpi eq, %c32_i32, %c0_i32 : i32
    %c1_i32 = arith.constant 1 : i32
    %2 = arith.select %1, %c1_i32, %c32_i32 : i32
    %3 = vector.broadcast %2 : i32 to vector<1x64xi32>
    %4 = arith.remsi %0, %3 : vector<1x64xi32>
    %c0_i32_0 = arith.constant 0 : i32
    %5 = vector.broadcast %c0_i32_0 : i32 to vector<1x64xi32>
    %6 = arith.cmpi ne, %4, %5 : vector<1x64xi32>
    %c0_i32_1 = arith.constant 0 : i32
    %7 = vector.broadcast %c0_i32_1 : i32 to vector<1x64xi32>
    %8 = arith.cmpi slt, %4, %7 : vector<1x64xi32>
    %c0_i32_2 = arith.constant 0 : i32
    %9 = arith.cmpi slt, %2, %c0_i32_2 : i32
    %10 = vector.broadcast %9 : i1 to vector<1x64xi1>
    %11 = vector.broadcast %10 : vector<1x64xi1> to vector<1x64xi1>
    %12 = arith.xori %8, %11 : vector<1x64xi1>
    %13 = arith.andi %12, %6 : vector<1x64xi1>
    %14 = vector.broadcast %2 : i32 to vector<1x64xi32>
    %15 = arith.addi %4, %14 : vector<1x64xi32>
    %16 = arith.select %13, %15, %4 : vector<1x64xi1>, vector<1x64xi32>
    %17 = arith.sitofp %16 : vector<1x64xi32> to vector<1x64xf32>
    %cst = arith.constant -0.575646281 : f32
    %18 = vector.broadcast %cst : f32 to vector<1x64xf32>
    %19 = arith.mulf %17, %18 : vector<1x64xf32>
    %20 = math.exp %19 : vector<1x64xf32>
    %c1_i32_3 = arith.constant 1 : i32
    %21 = vector.broadcast %c1_i32_3 : i32 to vector<1x64xi32>
    %22 = arith.andi %16, %21 : vector<1x64xi32>
    %23 = arith.sitofp %22 : vector<1x64xi32> to vector<1x64xf32>
    %cst_4 = arith.constant 1.57079637 : f32
    %24 = vector.broadcast %cst_4 : f32 to vector<1x64xf32>
    %25 = arith.mulf %23, %24 : vector<1x64xf32>
    %26 = tpu.iota {dimensions = array<i32: 0>} : vector<8x1xi32>
    %27 = arith.sitofp %26 : vector<8x1xi32> to vector<8x1xf32>
    %28 = vector.broadcast %27 : vector<8x1xf32> to vector<8x64xf32>
    %29 = vector.broadcast %20 : vector<1x64xf32> to vector<8x64xf32>
    %30 = arith.mulf %28, %29 : vector<8x64xf32>
    %31 = vector.broadcast %25 : vector<1x64xf32> to vector<8x64xf32>
    %32 = arith.addf %30, %31 : vector<8x64xf32>
    %33 = math.sin %32 : vector<8x64xf32>
    %c0 = arith.constant 0 : index
    %c0_5 = arith.constant 0 : index
    %34 = vector.load %arg1[%c0, %c0_5] : memref<8x64xf32, #tpu.memory_space<vmem>>, vector<8x64xf32>
    %cst_6 = arith.constant 5.65685415 : f32
    %35 = vector.broadcast %cst_6 : f32 to vector<8x64xf32>
    %36 = arith.mulf %34, %35 : vector<8x64xf32>
    %37 = arith.addf %36, %33 : vector<8x64xf32>
    %c0_7 = arith.constant 0 : index
    %c0_8 = arith.constant 0 : index
    %38 = vector.load %arg2[%c0_7, %c0_8] : memref<8x64xf32, #tpu.memory_space<vmem>>, vector<8x64xf32>
    tpu.vector_store %arg2[%c0_7, %c0_8], %37 {strides = array<i32>} : memref<8x64xf32, #tpu.memory_space<vmem>>, vector<8x64xf32>,
    return
  }
  func.func @transform_0(%arg0: i32) -> (i32, i32) {
    %c0_i32 = arith.constant 0 : i32
    %c0_i32_0 = arith.constant 0 : i32
    return %c0_i32, %arg0 : i32, i32
  }
  func.func @transform_1(%arg0: i32) -> (i32, i32) {
    %c0_i32 = arith.constant 0 : i32
    %c0_i32_0 = arith.constant 0 : i32
    return %c0_i32, %arg0 : i32, i32
  }
}

</mosaic_0001>

<llo_original>
// kernel: tpu_custom_call.1
$region0: #{tpu_custom_call.1}
  #allocation0 [shape = 'u32[]', space=smem, size = 0x4, offset = 0x4, fixed_abs, tag = 'smem constant byte address 0x4 - core index']
  #allocation1 [shape = 'u32[144,128]{1,0:T(1,128)}', space=vmem, size = 0x12000, scoped, tag = 'internal scratch']
  %s0 = inlined_call_operand.hbm [shape: f32[8,64], index: 0, kind: input, shape index: {}]
  %s1 = inlined_call_operand.hbm [shape: f32[8,64], index: 1, kind: output, shape index: {}]
  %s2 = sld [smem:[#allocation0]]
  $region18: #{tpu_custom_call.1} parent=0
    _
  %s4 = ssub.s32 1, %s2
  %s5 = scalar_select 0, %s4, %s2
  $region1: #{tpu_custom_call.1} parent=0
    #allocation2 [shape = 'u8[4096]{0}', space=vmem, size = 0x1000, scoped, tag = 'input window, operand 0, single buffered']
    #allocation3 [shape = 's32[1]{0}', space=sflag, size = 0x4, scoped, tag = 'scoped memory for tpu_custom_call.1']
    #allocation4 [shape = 's32[1]{0}', space=sflag, size = 0x4, scoped, tag = 'scoped memory for tpu_custom_call.1']
    #allocation5 [shape = 'u8[4096]{0}', space=vmem, size = 0x1000, scoped, tag = 'output window, operand 0, single buffered']
    %6 = vsyncpa [#allocation3], 0
    %7 = vsyncpa [#allocation4], 0
    // Predicated region
    $region2: #{tpu_custom_call.1} parent=1 // pred_check
      _
    $region3: #{tpu_custom_call.1} parent=1 // pred_check_branch
      %9 = sbr.rel (0) target = $region5
    $region4: #{tpu_custom_call.1} parent=1 // pred_region
      %s11 = ssub.s32 128, 128
      %12 = vsyncadd [#allocation3], %s11
      %s14 = sshll.u32 [#allocation2], 4
      %s15 = int_to_ptr.vmem [resolvable:$true] %s14
      %17 = dma.hbm_to_vmem [thread:$0]  %s0, 128, %s15, [#allocation3]
    $region5: #{tpu_custom_call.1} parent=1 // pred_fallthru
      _
    // Predicated region
    $region6: #{tpu_custom_call.1} parent=1 // pred_check
      _
    $region7: #{tpu_custom_call.1} parent=1 // pred_check_branch
      %19 = sbr.rel (0) target = $region9
    $region8: #{tpu_custom_call.1} parent=1 // pred_region
      %20 = dma.done [#allocation3], 128
    $region9: #{tpu_custom_call.1} parent=1 // pred_fallthru
      _
    %v21 = vlaneseq
    %v22 = vand.u32 %v21, 127
    %vm23 = vcmp.lt.s32.totalorder %v22, 0
    %v24 = vsub.s32 0, %v22
    %v25 = vsel %vm23, %v24, %v22
    %v26 = vshrl.u32 %v25, 5
    %v27 = vand.u32 %v25, 31
    %v28 = vsub.s32 0, %v27
    %v29 = vsel %vm23, %v28, %v27
    %vm30 = vcmp.ne.s32.totalorder %v29, 0
    %vm31 = vcmp.lt.s32.totalorder %v29, 0
    %vm32 = vmand %vm31, %vm30
    %v33 = vadd.s32 %v29, 32
    %v34 = vsel %vm32, %v33, %v29
    %v35 = vcvt.s32.f32 %v34
    %v36 = vmul.f32 %v35, -0.5756463
    %v37 = vmul.f32 %v36, 1.442695
    %v38 = vpow.pop %v37
    %v39 = vand.u32 %v34, 1
    %v40 = vcvt.s32.f32 %v39
    %v41 = vmul.f32 %v40, 1.5707964
    %v42 = vlaneseq
    %v43 = vshrl.u32 %v42, 7
    %v44 = vcvt.s32.f32 %v43
    %v45 = vmul.f32 %v44, %v38
    %v46 = vadd.f32 %v45, %v41
    %v47 = vand.u32 2147483647, %v46
    %vm48 = vcmp.le.f32.partialorder %v47, 0.7853982
    %vm49 = vcmp.lt.s32.totalorder %v46, 0
    %v50 = vand.u32 %v46, 2139095040
    %v51 = vshrl.u32 %v50, 23
    %v52 = vsub.s32 %v51, 127
    %v53 = vand.u32 2147483647, %v46
    %v54 = vand.u32 %v53, 8388607
    %v55 = vor.u32 %v54, 8388608
    %v56 = vsub.s32 0, %v55
    %v57 = vadd.s32 %v52, 1
    %vm58 = vcmp.gt.s32.totalorder %v57, 0
    %v59 = vsel %vm58, %v57, 0
    %v60 = vshrl.u32 %v59, 5
    %v61 = vand.u32 %v59, 31
    %v62 = vsub.s32 32, %v61
    %v63 = vshrl.u32 683565275, %v62
    %v64 = vshll.u32 683565275, %v61
    %v65 = vshrl.u32 2475754826, %v62
    %v66 = vor.u32 %v64, %v65
    %v67 = vshll.u32 2475754826, %v61
    %v68 = vshrl.u32 2131351028, %v62
    %v69 = vor.u32 %v67, %v68
    %v70 = vshll.u32 2131351028, %v61
    %v71 = vshrl.u32 2102212464, %v62
    %v72 = vor.u32 %v70, %v71
    %v73 = vshll.u32 2102212464, %v61
    %v74 = vshrl.u32 920167782, %v62
    %v75 = vor.u32 %v73, %v74
    %v76 = vshll.u32 920167782, %v61
    %v77 = vshrl.u32 1326507024, %v62
    %v78 = vor.u32 %v76, %v77
    %vm79 = vcmp.lt.s32.totalorder %v60, 1
    %vm80 = vcmp.lt.s32.totalorder %v60, 2
    %vm81 = vcmp.lt.s32.totalorder %v60, 3
    %vm82 = vcmp.lt.s32.totalorder %v60, 4
    %v83 = vsel %vm79, %v63, %v66
    %v84 = vsel %vm82, %v72, 2102212464
    %v85 = vsel %vm81, %v69, %v84
    %v86 = vsel %vm80, %v83, %v85
    %v87 = vsel %vm79, %v66, %v69
    %v88 = vsel %vm82, %v75, 920167782
    %v89 = vsel %vm81, %v72, %v88
    %v90 = vsel %vm80, %v87, %v89
    %v91 = vsel %vm79, %v69, %v72
    %v92 = vsel %vm82, %v78, 1326507024
    %v93 = vsel %vm81, %v75, %v92
    %v94 = vsel %vm80, %v91, %v93
    %v95 = vshll.u32 %v55, 8
    %v96 = vmul.u32.u64.compose %v95, %v94
    %v97 = vextract.low.u32 %v96
    %v98 = vextract.high.u32 %v96
    %v99 = vmul.u32.u64.compose %v95, %v90
    %v100 = vextract.low.u32 %v99
    %v101 = vextract.high.u32 %v99
    %v102 = vmul.u32 %v95, %v86
    %v103 = vadd.s32 %v98, %v100
    %vm104 = vc.u32 %v98, %v100
    %v105 = vadd.s32 %v101, 1
    %v106 = vsel %vm104, %v105, %v101
    %v107 = vadd.s32 %v102, %v106
    %v108 = vadd.s32 %v107, 536870912
    %v109 = vshrl.u32 %v108, 30
    %v110 = vshll.u32 %v109, 30
    %v111 = vsub.s32 %v107, %v110
    %vm112 = vcmp.lt.s32.totalorder %v111, 0
    %v113 = vsub.s32 0, %v111
    %v114 = vsel %vm112, %v113, %v111
    %v115 = vclz %v114
    %v116 = vsub.s32 %v115, 2
    %vm117 = vcmp.gt.s32.totalorder 0, %v116
    %v118 = vsel %vm117, 0, %v116
    %v119 = vsub.s32 32, %v118
    %v120 = vshll.u32 %v111, %v118
    %v121 = vshrl.u32 %v103, %v119
    %v122 = vor.u32 %v120, %v121
    %v123 = vsub.s32 4294967266, %v118
    %v124 = vadd.s32 %v123, 127
    %v125 = vshll.u32 %v124, 23
    %v126 = vor.u32 4788187, %v125
    %v127 = vand.u32 2147483647, %v126
    %v129 = vcvt.s32.f32 %v122
    %v130 = vmul.f32 %v129, %v127
    %v131 = vxor.u32 %v130, 2147483648
    %v132 = vsel %vm49, %v131, %v130
    %v133 = vsub.s32 4, %v109
    %v134 = vsel %vm49, %v133, %v109
    %v135 = vsel %vm48, %v46, %v132
    %v136 = vsel %vm48, 0, %v134
    %v137 = vcosq.f32.pop %v135
    %v138 = vsinq.f32.pop %v135
    %vm139 = vweird.f32 %v46
    %v140 = vadd.s32 %v136, 3
    %v141 = vand.u32 %v140, 3
    %vm142 = vcmp.lt.s32.totalorder %v141, 2
    %vm143 = vcmp.eq.s32.totalorder %v141, 0
    %v144 = vxor.u32 %v138, 2147483648
    %v145 = vsel %vm143, %v137, %v144
    %vm146 = vcmp.eq.s32.totalorder %v141, 2
    %v147 = vxor.u32 %v137, 2147483648
    %v148 = vsel %vm146, %v147, %v138
    %v149 = vsel %vm142, %v145, %v148
    %v150 = vsel %vm139, nan, %v149
    %v151 = vld [vmem:[#allocation2] sm:$0xff]
    %v152 = vmul.f32 %v151, 5.656854
    %v153 = vadd.f32 %v152, %v150
    %vm154 = vcmask 523264
    %155 = vst.msk [vmem:[#allocation5] sm:$0xff] %vm154, %v153
    // Predicated region
    $region10: #{tpu_custom_call.1} parent=1 // pred_check
      _
    $region11: #{tpu_custom_call.1} parent=1 // pred_check_branch
      %157 = sbr.rel (0) target = $region13
    $region12: #{tpu_custom_call.1} parent=1 // pred_region
      %s159 = ssub.s32 128, 128
      %160 = vsyncadd [#allocation4], %s159
      %s162 = sshll.u32 [#allocation5], 4
      %s163 = int_to_ptr.vmem [resolvable:$true] %s162
      %165 = dma.vmem_to_hbm [thread:$0]  %s163, 128, %s1, [#allocation4]
    $region13: #{tpu_custom_call.1} parent=1 // pred_fallthru
      _
    // Predicated region
    $region14: #{tpu_custom_call.1} parent=1 // pred_check
      _
    $region15: #{tpu_custom_call.1} parent=1 // pred_check_branch
      %167 = sbr.rel (0) target = $region17
    $region16: #{tpu_custom_call.1} parent=1 // pred_region
      %168 = dma.done [#allocation4], 128
    $region17: #{tpu_custom_call.1} parent=1 // pred_fallthru
      _
    %169 = vsyncpa [#allocation3], 1
    %170 = vsyncpa [#allocation4], 1

</llo_original>
